<compile_context>
chip_gen: v7x
topology: tpu7x:2x2x1
jax: 0.10.0
libtpu: 0.0.40
codegen_flags: <defaults>
</compile_context>

<pallas_src>
import jax
import jax.numpy as jnp
from jax import lax
from jax.experimental import pallas as pl
from jax.experimental.pallas import tpu as pltpu


def _conv5_kernel(x_ref, w_ref, scale_ref, shift_ref, o_ref, acc_ref):
    """Temporal conv (kt,1,1) + folded BN + ReLU for one (batch, HW-tile) block.

    x_ref:     (1, T, hw, Cin)   bf16, channels-last
    w_ref:     (kt, Cin, Cout)   bf16
    scale_ref: (1, Cout)         f32   gamma / sqrt(var + eps)
    shift_ref: (1, Cout)         f32   beta - mean * scale
    o_ref:     (1, T, hw, Cout)
    acc_ref:   (T*hw, Cout)      f32 VMEM scratch accumulator
    """
    T = x_ref.shape[1]
    hw = x_ref.shape[2]
    cin = x_ref.shape[3]
    cout = o_ref.shape[3]
    kt = w_ref.shape[0]
    pad = kt // 2

    # Centre tap covers every output frame -> one big (T*hw, Cin)x(Cin, Cout)
    # MXU matmul initializes the accumulator.
    xm = x_ref[0].reshape(T * hw, cin)
    acc_ref[...] = jnp.dot(xm, w_ref[pad], preferred_element_type=jnp.float32)

    # Off-centre taps touch only a static sub-range of output frames; this is
    # the temporal zero-padding handled in-kernel (no wrapper-side jnp.pad).
    for dt in range(kt):                    # kt is static and small (1 or 3)
        s = dt - pad
        if s == 0:
            continue
        t0 = max(0, -s)
        t1 = T - max(0, s)
        n = t1 - t0
        if n <= 0:
            continue
        xs = x_ref[0, pl.ds(t0 + s, n)].reshape(n * hw, cin)
        acc_ref[pl.ds(t0 * hw, n * hw), :] += jnp.dot(
            xs, w_ref[dt], preferred_element_type=jnp.float32)

    # Fused BN (inference) + ReLU epilogue in f32, one full-block store.
    y = acc_ref[...] * scale_ref[...] + shift_ref[...]
    y = jnp.maximum(y, 0.0)
    o_ref[...] = y.reshape(1, T, hw, cout).astype(o_ref.dtype)


def _pick_hw_tile(hw, t, cin, cout, out_itemsize,
                  budget_bytes=16 * 1024 * 1024):
    """Largest HW tile (multiple of 8, dividing HW) that fits the VMEM budget.

    Budget accounts for the double-buffered bf16 input block, double-buffered
    output block and the single f32 accumulator scratch.  16 MiB keeps the
    kernel comfortably inside v7x's 64 MiB VMEM (and every older generation).
    """
    per_row = t * (2 * 2 * cin + 2 * out_itemsize * cout + 4 * cout)
    max_tile = max(8, budget_bytes // max(per_row, 1))
    divs = [d for d in range(8, hw + 1, 8) if hw % d == 0]
    if not divs:
        return hw                       # full dim is always a legal block
    fitting = [d for d in divs if d <= max_tile]
    return max(fitting) if fitting else min(divs)


def conv5_pathway(x, w, gamma, beta, running_mean, running_var, eps=1e-5):
    """One pathway of SlowFastShuffleConv5.

    x: (N, C_in, T, H, W)  float32, NCTHW (PyTorch layout)
    w: (C_out, C_in, kt, 1, 1)
    Returns (N, C_out, T, H, W) float32.
    """
    N, Cin, T, H, W = x.shape
    Cout, Cin_w, kt, kh, kw = w.shape
    assert Cin_w == Cin and kh == 1 and kw == 1
    assert kt % 2 == 1, "temporal kernel must be odd (SlowFast uses 1/3/5/7)"
    HW = H * W
    # Keep the flattened (T*HW) matmul M dimension sublane-aligned.
    HW_pad = ((HW + 7) // 8) * 8

    # Channels-last + bf16 activations.
    x_cl = jnp.transpose(x, (0, 2, 3, 4, 1)).reshape(N, T, HW, Cin)
    if HW_pad != HW:
        x_cl = jnp.pad(x_cl, ((0, 0), (0, 0), (0, HW_pad - HW), (0, 0)))
    x_cl = x_cl.astype(jnp.bfloat16)

    # (kt, Cin, Cout) bf16: each temporal tap is a plain (Cin x Cout) matmul.
    wk = jnp.transpose(w[:, :, :, 0, 0], (2, 1, 0)).astype(jnp.bfloat16)

    # Fold BN (inference / running stats) into per-channel scale & shift (f32).
    scale = (gamma / jnp.sqrt(running_var + eps)).astype(jnp.float32)
    shift = (beta - running_mean * scale).astype(jnp.float32)
    scale2 = scale.reshape(1, Cout)
    shift2 = shift.reshape(1, Cout)

    out_dtype = x.dtype
    hw_tile = _pick_hw_tile(HW_pad, T, Cin, Cout,
                            jnp.dtype(out_dtype).itemsize)
    grid = (N, HW_pad // hw_tile)

    out = pl.pallas_call(
        _conv5_kernel,
        out_shape=jax.ShapeDtypeStruct((N, T, HW_pad, Cout), out_dtype),
        grid_spec=pltpu.PrefetchScalarGridSpec(
            num_scalar_prefetch=0,
            grid=grid,
            in_specs=[
                pl.BlockSpec((1, T, hw_tile, Cin), lambda n, h: (n, 0, h, 0)),
                pl.BlockSpec((kt, Cin, Cout), lambda n, h: (0, 0, 0)),
                pl.BlockSpec((1, Cout), lambda n, h: (0, 0)),
                pl.BlockSpec((1, Cout), lambda n, h: (0, 0)),
            ],
            out_specs=pl.BlockSpec((1, T, hw_tile, Cout),
                                   lambda n, h: (n, 0, h, 0)),
            scratch_shapes=[pltpu.VMEM((T * hw_tile, Cout), jnp.float32)],
        ),
        compiler_params=pltpu.CompilerParams(
            dimension_semantics=("parallel", "parallel"),
            vmem_limit_bytes=32 * 1024 * 1024,
        ),
    )(x_cl, wk, scale2, shift2)

    if HW_pad != HW:
        out = out[:, :, :HW, :]
    # back to NCTHW
    return jnp.transpose(out.reshape(N, T, H, W, Cout), (0, 4, 1, 2, 3))


def conv5_pathway_ref(x, w, gamma, beta, running_mean, running_var, eps=1e-5):
    """Plain-JAX f32 reference for correctness checking."""
    N, Cin, T, H, W = x.shape
    Cout, _, kt, _, _ = w.shape
    pad = kt // 2
    x_p = jnp.pad(x, ((0, 0), (0, 0), (pad, pad), (0, 0), (0, 0)))
    out = jnp.zeros((N, Cout, T, H, W), jnp.float32)
    for dt in range(kt):
        out = out + jnp.einsum('ncthw,oc->nothw',
                               lax.dynamic_slice_in_dim(x_p, dt, T, axis=2),
                               w[:, :, dt, 0, 0])
    scale = (gamma / jnp.sqrt(running_var + eps)).reshape(1, Cout, 1, 1, 1)
    shift = (beta - running_mean * gamma / jnp.sqrt(running_var + eps)
             ).reshape(1, Cout, 1, 1, 1)
    return jnp.maximum(out * scale + shift, 0.0)


class SlowFastShuffleConv5Pallas:
    """JAX/Pallas equivalent of SlowFastShuffleConv5 (inference)."""

    def __init__(self, dim_in, dim_out, temp_kernel, key):
        assert len({len(dim_in), len(dim_out), len(temp_kernel)}) == 1
        self.num_pathways = len(dim_in)
        self.params = []
        for p in range(self.num_pathways):
            kt = temp_kernel[p][0]
            key, kw_, kg, kb, km, kv = jax.random.split(key, 6)
            w = jax.random.normal(kw_, (dim_out[p], dim_in[p], kt, 1, 1),
                                  jnp.float32) * 0.05
            gamma = 1.0 + 0.1 * jax.random.normal(kg, (dim_out[p],),
                                                  jnp.float32)
            beta = 0.1 * jax.random.normal(kb, (dim_out[p],), jnp.float32)
            rmean = 0.1 * jax.random.normal(km, (dim_out[p],), jnp.float32)
            rvar = jax.random.uniform(kv, (dim_out[p],), jnp.float32,
                                      minval=0.5, maxval=1.5)
            self.params.append((w, gamma, beta, rmean, rvar))

    def __call__(self, inputs):
        outputs = []
        for p in range(self.num_pathways):
            w, gamma, beta, rmean, rvar = self.params[p]
            outputs.append(conv5_pathway(inputs[p], w, gamma, beta,
                                         rmean, rvar))
        return outputs

    def reference(self, inputs):
        outputs = []
        for p in range(self.num_pathways):
            w, gamma, beta, rmean, rvar = self.params[p]
            outputs.append(
                conv5_pathway_ref(inputs[p], w, gamma, beta, rmean, rvar))
        return outputs


if __name__ == "__main__":
    key = jax.random.PRNGKey(0)

    # Two pathways (slow / fast), as in SlowFast.
    dim_in = [32, 8]
    dim_out = [64, 16]
    temp_kernel = [[1], [3]]

    key, k0, k1, kmod = jax.random.split(key, 4)
    # NCTHW inputs: slow pathway has fewer frames, fast has more.
    x_slow = jax.random.normal(k0, (2, 32, 4, 8, 8), jnp.float32)
    x_fast = jax.random.normal(k1, (2, 8, 16, 8, 8), jnp.float32)
    inputs = [x_slow, x_fast]

    model = SlowFastShuffleConv5Pallas(dim_in, dim_out, temp_kernel, kmod)

    outs = model(inputs)
    outs = [jax.block_until_ready(o) for o in outs]

    # Numerical check against the plain-JAX f32 reference (bf16 matmul inputs
    # => loosened tolerance).
    refs = model.reference(inputs)
    for o, r in zip(outs, refs):
        assert o.shape == r.shape, (o.shape, r.shape)
        assert jnp.allclose(o, r, atol=2e-2, rtol=2e-2), \
            "mismatch vs reference"

    print("KERNEL_OK")
</pallas_src>

<mosaic_0001>
module attributes {stable_mosaic.version = 11 : i64} {
  func.func @_conv5_kernel(%arg0: i32, %arg1: i32, %arg2: memref<1x4x64x32xbf16, #tpu.memory_space<vmem>>, %arg3: memref<1x32x64xbf16, #tpu.memory_space<vmem>>, %arg4: memref<1x64xf32, #tpu.memory_space<vmem>>, %arg5: memref<1x64xf32, #tpu.memory_space<vmem>>, %arg6: memref<1x4x64x64xf32, #tpu.memory_space<vmem>>, %arg7: memref<256x64xf32, #tpu.memory_space<vmem>>) attributes {dimension_semantics = [#tpu.dimension_semantics<parallel>, #tpu.dimension_semantics<parallel>], iteration_bounds = array<i64: 2, 1>, scalar_prefetch = 0 : i64, scratch_operands = 1 : i64, tpu.core_type = #tpu.core_type<tc>, window_params = [{transform_indices = @transform_0, window_bounds = array<i64: 1, 4, 64, 32>}, {pipeline_mode = #tpu.pipeline_mode<synchronous>, transform_indices = @transform_1, window_bounds = array<i64: 1, 32, 64>}, {pipeline_mode = #tpu.pipeline_mode<synchronous>, transform_indices = @transform_2, window_bounds = array<i64: 1, 64>}, {pipeline_mode = #tpu.pipeline_mode<synchronous>, transform_indices = @transform_3, window_bounds = array<i64: 1, 64>}, {transform_indices = @transform_4, window_bounds = array<i64: 1, 4, 64, 64>}]} {
    %c0 = arith.constant 0 : index
    %c0_0 = arith.constant 0 : index
    %c0_1 = arith.constant 0 : index
    %c0_2 = arith.constant 0 : index
    %0 = vector.load %arg2[%c0, %c0_0, %c0_1, %c0_2] : memref<1x4x64x32xbf16, #tpu.memory_space<vmem>>, vector<1x4x64x32xbf16>
    %1 = vector.shape_cast %0 : vector<1x4x64x32xbf16> to vector<4x64x32xbf16>
    %2 = vector.shape_cast %1 : vector<4x64x32xbf16> to vector<256x32xbf16>
    %c0_3 = arith.constant 0 : index
    %c0_4 = arith.constant 0 : index
    %c0_5 = arith.constant 0 : index
    %3 = vector.load %arg3[%c0_3, %c0_4, %c0_5] : memref<1x32x64xbf16, #tpu.memory_space<vmem>>, vector<1x32x64xbf16>
    %4 = vector.shape_cast %3 : vector<1x32x64xbf16> to vector<32x64xbf16>
    %cst = arith.constant dense<0.000000e+00> : vector<256x64xf32>
    %5 = tpu.matmul %2, %4, %cst {dimension_numbers = #tpu.dot_dimension_numbers<[1], [0], [0], [1], [0, 0, 1, 1], [], []>} : vector<256x32xbf16>, vector<32x64xbf16>, vector<256x64xf32> -> vector<256x64xf32>
    %c0_6 = arith.constant 0 : index
    %c0_7 = arith.constant 0 : index
    %6 = vector.load %arg7[%c0_6, %c0_7] : memref<256x64xf32, #tpu.memory_space<vmem>>, vector<256x64xf32>
    tpu.vector_store %arg7[%c0_6, %c0_7], %5 {strides = array<i32>} : memref<256x64xf32, #tpu.memory_space<vmem>>, vector<256x64xf32>,
    %c0_8 = arith.constant 0 : index
    %c0_9 = arith.constant 0 : index
    %7 = vector.load %arg7[%c0_8, %c0_9] : memref<256x64xf32, #tpu.memory_space<vmem>>, vector<256x64xf32>
    %c0_10 = arith.constant 0 : index
    %c0_11 = arith.constant 0 : index
    %8 = vector.load %arg4[%c0_10, %c0_11] : memref<1x64xf32, #tpu.memory_space<vmem>>, vector<1x64xf32>
    %9 = vector.broadcast %8 : vector<1x64xf32> to vector<256x64xf32>
    %10 = arith.mulf %7, %9 : vector<256x64xf32>
    %c0_12 = arith.constant 0 : index
    %c0_13 = arith.constant 0 : index
    %11 = vector.load %arg5[%c0_12, %c0_13] : memref<1x64xf32, #tpu.memory_space<vmem>>, vector<1x64xf32>
    %12 = vector.broadcast %11 : vector<1x64xf32> to vector<256x64xf32>
    %13 = arith.addf %10, %12 : vector<256x64xf32>
    %cst_14 = arith.constant 0.000000e+00 : f32
    %14 = vector.broadcast %cst_14 : f32 to vector<256x64xf32>
    %15 = arith.maximumf %13, %14 : vector<256x64xf32>
    %16 = vector.shape_cast %15 : vector<256x64xf32> to vector<1x4x64x64xf32>
    %c0_15 = arith.constant 0 : index
    %c0_16 = arith.constant 0 : index
    %c0_17 = arith.constant 0 : index
    %c0_18 = arith.constant 0 : index
    %17 = vector.load %arg6[%c0_15, %c0_16, %c0_17, %c0_18] : memref<1x4x64x64xf32, #tpu.memory_space<vmem>>, vector<1x4x64x64xf32>
    tpu.vector_store %arg6[%c0_15, %c0_16, %c0_17, %c0_18], %16 {strides = array<i32>} : memref<1x4x64x64xf32, #tpu.memory_space<vmem>>, vector<1x4x64x64xf32>,
    return
  }
  func.func @transform_0(%arg0: i32, %arg1: i32) -> (i32, i32, i32, i32) {
    %c0_i32 = arith.constant 0 : i32
    %c0_i32_0 = arith.constant 0 : i32
    %c0_i32_1 = arith.constant 0 : i32
    return %arg0, %c0_i32, %arg1, %c0_i32_0 : i32, i32, i32, i32
  }
  func.func @transform_1(%arg0: i32, %arg1: i32) -> (i32, i32, i32) {
    %c0_i32 = arith.constant 0 : i32
    %c0_i32_0 = arith.constant 0 : i32
    %c0_i32_1 = arith.constant 0 : i32
    %c0_i32_2 = arith.constant 0 : i32
    return %c0_i32, %c0_i32_0, %c0_i32_1 : i32, i32, i32
  }
  func.func @transform_2(%arg0: i32, %arg1: i32) -> (i32, i32) {
    %c0_i32 = arith.constant 0 : i32
    %c0_i32_0 = arith.constant 0 : i32
    %c0_i32_1 = arith.constant 0 : i32
    return %c0_i32, %c0_i32_0 : i32, i32
  }
  func.func @transform_3(%arg0: i32, %arg1: i32) -> (i32, i32) {
    %c0_i32 = arith.constant 0 : i32
    %c0_i32_0 = arith.constant 0 : i32
    %c0_i32_1 = arith.constant 0 : i32
    return %c0_i32, %c0_i32_0 : i32, i32
  }
  func.func @transform_4(%arg0: i32, %arg1: i32) -> (i32, i32, i32, i32) {
    %c0_i32 = arith.constant 0 : i32
    %c0_i32_0 = arith.constant 0 : i32
    %c0_i32_1 = arith.constant 0 : i32
    return %arg0, %c0_i32, %arg1, %c0_i32_0 : i32, i32, i32, i32
  }
}

</mosaic_0001>

<llo_original>
// kernel: tpu_custom_call.1
$region0: #{tpu_custom_call.1}
  #allocation0 [shape = 'u32[]', space=smem, size = 0x4, offset = 0x4, fixed_abs, tag = 'smem constant byte address 0x4 - core index']
  #allocation1 [shape = 'u32[144,128]{1,0:T(1,128)}', space=vmem, size = 0x12000, scoped, tag = 'internal scratch']
  #allocation2 [shape = 'f32[256,64]{1,0:T(8,128)}', space=vmem, size = 0x20000, scoped, tag = 'scratch operand']
  %s0 = inlined_call_operand.vmem [shape: bf16[2,4,64,32], index: 0, kind: input, shape index: {}]
  %s1 = inlined_call_operand.vmem [shape: bf16[1,32,64], index: 1, kind: input, shape index: {}]
  %s2 = inlined_call_operand.vmem [shape: f32[1,64], index: 2, kind: input, shape index: {}]
  %s3 = inlined_call_operand.vmem [shape: f32[1,64], index: 3, kind: input, shape index: {}]
  %s4 = inlined_call_operand.hbm [shape: f32[2,4,64,64], index: 4, kind: output, shape index: {}]
  %s5 = sld [smem:[#allocation0]]
  $region49: #{tpu_custom_call.1} parent=0
    _
  %s7 = ssub.s32 1, %s5
  %s8 = scalar_select 0, %s7, %s5
  $region1: #{tpu_custom_call.1} parent=0
    #allocation3 [shape = 'u8[262144]{0}', space=vmem, size = 0x40000, scoped, tag = 'output window, operand 0']
    #allocation4 [shape = 's32[2]{0}', space=sflag, size = 0x8, scoped, tag = 'scoped memory for tpu_custom_call.1']
    %9 = vsyncpa [#allocation4], 0
    %s10 = scalar_lea.sflag [#allocation4], 1
    %11 = vsyncpa %s10, 0
    loop: start=0, step=1, limit=4
    $region2: #{tpu_custom_call.1} parent=1 // loop_pre_header
      _
    $region3: #{tpu_custom_call.1} parent=1 // loop_header
      %s13 = sphi 0, %s17
      %p14 = scmp.ge.s32.totalorder %s13, 4
      %s20 = sphi 0, %s32
      %s21 = sphi 0, %s28
      %s22 = sphi 0, %s20
      %s23 = sphi 0, %s21
      %s24 = sphi 0, %s22
      %s25 = sphi 0, %s23
      %s37 = sphi 0, %s39
      %s40 = sphi 0, %s37
      %s41 = sphi 0, %s40
      %s57 = sphi 0, %s41
      %s61 = sphi 0, %s61
      %s63 = sphi 0, %s61
      %s64 = sphi 0, %s63
      %s78 = sphi 0, %s64
      %s82 = sphi 0, %s82
      %s84 = sphi 0, %s82
      %s85 = sphi 0, %s84
      %s99 = sphi 0, %s85
      %s103 = sphi 0, %s103
      %s105 = sphi 0, %s103
      %s106 = sphi 0, %s105
      %s120 = sphi 0, %s106
      %s128 = sphi 0, %s130
      %s131 = sphi 0, %s128
      %s132 = sphi 0, %s131
      %s148 = sphi 0, %s132
    $region4: #{tpu_custom_call.1} parent=1 // loop_header_branch
      %16 = sbr.rel (%p14) target = $region8
    $region5: #{tpu_custom_call.1} parent=1 // loop_body
      %s18 = ssub.s32 %s13, 1
      %s19 = ssub.s32 %s13, 2
      %s26 = sadd.s32 1, %s21
      %p27 = scmp.ge.s32.totalorder %s26, 1
      %s28 = scalar_select %p27, 0, %s26
      %s29 = sadd.s32 1, %s20
      %s30 = scalar_select %p27, %s29, %s20
      %p31 = scmp.ge.s32.totalorder %s30, 2
      %s32 = scalar_select %p31, 0, %s30
      %s33 = ssub.s32 %s20, %s32
      %s34 = ssub.s32 %s21, %s28
      %s35 = sor.u32 %s33, %s34
      %p36 = scmp.eq.s32.totalorder %s35, 0
      %s38 = sadd.s32 %s37, 1
      %s39 = scalar_select %p36, %s37, %s38
      %p42 = pneg %p36
      %p43 = scmp.eq.s32.totalorder %s13, 1
      %p44 = por %p42, %p43
      %p45 = scmp.ne.s32.totalorder %s37, %s40
      %p46 = scmp.eq.s32.totalorder %s13, 0
      %p47 = por %p45, %p46
      %p48 = scmp.ne.s32.totalorder %s37, %s40
      %p49 = scmp.eq.s32.totalorder %s18, 1
      %p50 = por %p48, %p49
      %p51 = scmp.ne.s32.totalorder %s40, %s41
      %p52 = scmp.eq.s32.totalorder %s18, 0
      %p53 = por %p51, %p52
      %p54 = scmp.ne.s32.totalorder %s40, %s41
      %p55 = scmp.eq.s32.totalorder %s19, 1
      %p56 = por %p54, %p55
      %p58 = scmp.ne.s32.totalorder %s41, %s57
      %p59 = scmp.eq.s32.totalorder %s19, 0
      %p60 = por %p58, %p59
      %s62 = sadd.s32 %s61, 1
      %p65 = scmp.eq.s32.totalorder %s13, 1
      %p66 = scmp.ne.s32.totalorder %s61, %s63
      %p67 = scmp.eq.s32.totalorder %s13, 0
      %p68 = por %p66, %p67
      %p69 = scmp.ne.s32.totalorder %s61, %s63
      %p70 = scmp.eq.s32.totalorder %s18, 1
      %p71 = por %p69, %p70
      %p72 = scmp.ne.s32.totalorder %s63, %s64
      %p73 = scmp.eq.s32.totalorder %s18, 0
      %p74 = por %p72, %p73
      %p75 = scmp.ne.s32.totalorder %s63, %s64
      %p76 = scmp.eq.s32.totalorder %s19, 1
      %p77 = por %p75, %p76
      %p79 = scmp.ne.s32.totalorder %s64, %s78
      %p80 = scmp.eq.s32.totalorder %s19, 0
      %p81 = por %p79, %p80
      %s83 = sadd.s32 %s82, 1
      %p86 = scmp.eq.s32.totalorder %s13, 1
      %p87 = scmp.ne.s32.totalorder %s82, %s84
      %p88 = scmp.eq.s32.totalorder %s13, 0
      %p89 = por %p87, %p88
      %p90 = scmp.ne.s32.totalorder %s82, %s84
      %p91 = scmp.eq.s32.totalorder %s18, 1
      %p92 = por %p90, %p91
      %p93 = scmp.ne.s32.totalorder %s84, %s85
      %p94 = scmp.eq.s32.totalorder %s18, 0
      %p95 = por %p93, %p94
      %p96 = scmp.ne.s32.totalorder %s84, %s85
      %p97 = scmp.eq.s32.totalorder %s19, 1
      %p98 = por %p96, %p97
      %p100 = scmp.ne.s32.totalorder %s85, %s99
      %p101 = scmp.eq.s32.totalorder %s19, 0
      %p102 = por %p100, %p101
      %s104 = sadd.s32 %s103, 1
      %p107 = scmp.eq.s32.totalorder %s13, 1
      %p108 = scmp.ne.s32.totalorder %s103, %s105
      %p109 = scmp.eq.s32.totalorder %s13, 0
      %p110 = por %p108, %p109
      %p111 = scmp.ne.s32.totalorder %s103, %s105
      %p112 = scmp.eq.s32.totalorder %s18, 1
      %p113 = por %p111, %p112
      %p114 = scmp.ne.s32.totalorder %s105, %s106
      %p115 = scmp.eq.s32.totalorder %s18, 0
      %p116 = por %p114, %p115
      %p117 = scmp.ne.s32.totalorder %s105, %s106
      %p118 = scmp.eq.s32.totalorder %s19, 1
      %p119 = por %p117, %p118
      %p121 = scmp.ne.s32.totalorder %s106, %s120
      %p122 = scmp.eq.s32.totalorder %s19, 0
      %p123 = por %p121, %p122
      %s124 = ssub.s32 %s20, %s32
      %s125 = ssub.s32 %s21, %s28
      %s126 = sor.u32 %s124, %s125
      %p127 = scmp.eq.s32.totalorder %s126, 0
      %s129 = sadd.s32 %s128, 1
      %s130 = scalar_select %p127, %s128, %s129
      %p133 = pneg %p127
      %p134 = scmp.eq.s32.totalorder %s13, 1
      %p135 = por %p133, %p134
      %p136 = scmp.ne.s32.totalorder %s128, %s131
      %p137 = scmp.eq.s32.totalorder %s13, 0
      %p138 = por %p136, %p137
      %p139 = scmp.ne.s32.totalorder %s128, %s131
      %p140 = scmp.eq.s32.totalorder %s18, 1
      %p141 = por %p139, %p140
      %p142 = scmp.ne.s32.totalorder %s131, %s132
      %p143 = scmp.eq.s32.totalorder %s18, 0
      %p144 = por %p142, %p143
      %p145 = scmp.ne.s32.totalorder %s131, %s132
      %p146 = scmp.eq.s32.totalorder %s19, 1
      %p147 = por %p145, %p146
      %p149 = scmp.ne.s32.totalorder %s132, %s148
      %p150 = scmp.eq.s32.totalorder %s19, 0
      %p151 = por %p149, %p150
      %p152 = scmp.le.s32.totalorder 1, %s13
      %p153 = scmp.lt.s32.totalorder %s13, 3
      %p154 = pnand %p152, %p153
      %p155 = pneg %p154
      // Predicated region
      $region9: #{tpu_custom_call.1} parent=5 // pred_check
        _
      $region10: #{tpu_custom_call.1} parent=5 // pred_check_branch
        %157 = sbr.rel (%p154) target = $region12
      $region11: #{tpu_custom_call.1} parent=5 // pred_region
        %s158 = ssub.s32 %s13, 1
        // Predicated region
        $region13: #{tpu_custom_call.1} parent=11 // pred_check
          %p159 = pneg %p74
        $region14: #{tpu_custom_call.1} parent=11 // pred_check_branch
          %161 = sbr.rel (%p159) target = $region16
        $region15: #{tpu_custom_call.1} parent=11 // pred_region
          _
        $region16: #{tpu_custom_call.1} parent=11 // pred_fallthru
          _
        // Predicated region
        $region17: #{tpu_custom_call.1} parent=11 // pred_check
          %p162 = pneg %p95
        $region18: #{tpu_custom_call.1} parent=11 // pred_check_branch
          %164 = sbr.rel (%p162) target = $region20
        $region19: #{tpu_custom_call.1} parent=11 // pred_region
          _
        $region20: #{tpu_custom_call.1} parent=11 // pred_fallthru
          _
        // Predicated region
        $region21: #{tpu_custom_call.1} parent=11 // pred_check
          %p165 = pneg %p116
        $region22: #{tpu_custom_call.1} parent=11 // pred_check_branch
          %167 = sbr.rel (%p165) target = $region24
        $region23: #{tpu_custom_call.1} parent=11 // pred_region
          _
        $region24: #{tpu_custom_call.1} parent=11 // pred_fallthru
          _
      $region12: #{tpu_custom_call.1} parent=5 // pred_fallthru
        _
      %p168 = scmp.lt.s32.totalorder %s13, 2
      // Predicated region
      $region25: #{tpu_custom_call.1} parent=5 // pred_check
        %p169 = pneg %p168
      $region26: #{tpu_custom_call.1} parent=5 // pred_check_branch
        %171 = sbr.rel (%p169) target = $region28
      $region27: #{tpu_custom_call.1} parent=5 // pred_region
        // Predicated region
        $region29: #{tpu_custom_call.1} parent=27 // pred_check
          %p172 = pneg %p47
        $region30: #{tpu_custom_call.1} parent=27 // pred_check_branch
          %174 = sbr.rel (%p172) target = $region32
        $region31: #{tpu_custom_call.1} parent=27 // pred_region
          %s175 = smul.u32 8, %s21
          %p176 = scmp.lt.s32.totalorder %s20, 1
          %s177 = scalar_select %p176, %s20, 1
          %p178 = scmp.lt.s32.totalorder %s175, 7
          %s179 = scalar_select %p178, %s175, 7
          %s180 = smul.addr %s177, 32
          %s181 = sadd.s32 %s179, %s180
          %s182 = smul.addr %s181, 4
          %s183 = scalar_lea.vmem %s0, %s182
          %s184 = smul.u32 8, %s21
        $region32: #{tpu_custom_call.1} parent=27 // pred_fallthru
          _
      $region28: #{tpu_custom_call.1} parent=5 // pred_fallthru
        _
      %p185 = scmp.le.s32.totalorder 1, %s13
      %p186 = scmp.lt.s32.totalorder %s13, 3
      %p187 = pnand %p185, %p186
      %p188 = pneg %p187
      // Predicated region
      $region33: #{tpu_custom_call.1} parent=5 // pred_check
        _
      $region34: #{tpu_custom_call.1} parent=5 // pred_check_branch
        %190 = sbr.rel (%p187) target = $region36
      $region35: #{tpu_custom_call.1} parent=5 // pred_region
        %s191 = ssub.s32 %s13, 1
        %s192 = smul.u32 8, %s23
        %p193 = scmp.lt.s32.totalorder %s22, 1
        %s194 = scalar_select %p193, %s22, 1
        %p195 = scmp.lt.s32.totalorder %s192, 7
        %s196 = scalar_select %p195, %s192, 7
        %s197 = smul.addr %s194, 32
        %s198 = sadd.s32 %s196, %s197
        %s199 = smul.addr %s198, 4
        %s200 = scalar_lea.vmem %s0, %s199
        %p201 = pneg %p53
        %p202 = pneg %p50
        %p203 = pneg %p74
        %p204 = pneg %p71
        %p205 = pneg %p95
        %p206 = pneg %p92
        %p207 = pneg %p116
        %p208 = pneg %p113
        %p209 = pneg %p144
        %p210 = pneg %p141
        %s211 = sand.u32 %s131, 1
        %s212 = scalar_lea.sflag [#allocation4], %s211
        %s213 = sand.u32 %s131, 1
        %s214 = smul.addr %s213, 256
        %s215 = scalar_lea.vmem [#allocation3], %s214
        %s216 = smul.u32 8, %s23
        %p217 = scmp.lt.s32.totalorder %s22, 1
        %s218 = scalar_select %p217, %s22, 1
        %p219 = scmp.lt.s32.totalorder %s216, 7
        %s220 = scalar_select %p219, %s216, 7
        %s221 = smul.addr %s218, 32
        %s222 = sadd.s32 %s220, %s221
        %s223 = smul.addr %s222, 4
        %s224 = scalar_lea.vmem %s0, %s223
        %s225 = smul.u32 8, %s23
        %s226 = smul.u32 8, %s23
        %v228 = vld [vmem:[%s224] sm:$0xf]
        %v229 = vld [vmem:[%s224 + $0x4] sm:$0xf]
        %v230 = vld [vmem:[%s224 + $0x8] sm:$0xf]
        %v231 = vld [vmem:[%s224 + $0xc] sm:$0xf]
        %v232 = vld [vmem:[%s224 + $0x10] sm:$0xf]
        %v233 = vld [vmem:[%s224 + $0x14] sm:$0xf]
        %v234 = vld [vmem:[%s224 + $0x18] sm:$0xf]
        %v235 = vld [vmem:[%s224 + $0x1c] sm:$0xf]
        %v236 = vld [vmem:[%s224 + $0x20] sm:$0xf]
        %v237 = vld [vmem:[%s224 + $0x24] sm:$0xf]
        %v238 = vld [vmem:[%s224 + $0x28] sm:$0xf]
        %v239 = vld [vmem:[%s224 + $0x2c] sm:$0xf]
        %v240 = vld [vmem:[%s224 + $0x30] sm:$0xf]
        %v241 = vld [vmem:[%s224 + $0x34] sm:$0xf]
        %v242 = vld [vmem:[%s224 + $0x38] sm:$0xf]
        %v243 = vld [vmem:[%s224 + $0x3c] sm:$0xf]
        %v244 = vld [vmem:[%s224 + $0x40] sm:$0xf]
        %v245 = vld [vmem:[%s224 + $0x44] sm:$0xf]
        %v246 = vld [vmem:[%s224 + $0x48] sm:$0xf]
        %v247 = vld [vmem:[%s224 + $0x4c] sm:$0xf]
        %v248 = vld [vmem:[%s224 + $0x50] sm:$0xf]
        %v249 = vld [vmem:[%s224 + $0x54] sm:$0xf]
        %v250 = vld [vmem:[%s224 + $0x58] sm:$0xf]
        %v251 = vld [vmem:[%s224 + $0x5c] sm:$0xf]
        %v252 = vld [vmem:[%s224 + $0x60] sm:$0xf]
        %v253 = vld [vmem:[%s224 + $0x64] sm:$0xf]
        %v254 = vld [vmem:[%s224 + $0x68] sm:$0xf]
        %v255 = vld [vmem:[%s224 + $0x6c] sm:$0xf]
        %v256 = vld [vmem:[%s224 + $0x70] sm:$0xf]
        %v257 = vld [vmem:[%s224 + $0x74] sm:$0xf]
        %v258 = vld [vmem:[%s224 + $0x78] sm:$0xf]
        %v259 = vld [vmem:[%s224 + $0x7c] sm:$0xf]
        %v260 = vld [vmem:[%s1] sm:$0xf]
        %v261 = vld [vmem:[%s1 + $0x4] sm:$0xf]
        %v262 = vld [vmem:[%s1 + $0x8] sm:$0xf]
        %v263 = vld [vmem:[%s1 + $0xc] sm:$0xf]
        %v296 = vunpack.c.l.b16 %v228
        %v297 = vunpack.c.l.b16 %v229
        %v298 = vunpack.c.l.b16 %v230
        %v299 = vunpack.c.l.b16 %v231
        %v300 = vunpack.c.l.b16 %v232
        %v301 = vunpack.c.l.b16 %v233
        %v302 = vunpack.c.l.b16 %v234
        %v303 = vunpack.c.l.b16 %v235
        %v304 = vunpack.c.l.b16 %v236
        %v305 = vunpack.c.l.b16 %v237
        %v306 = vunpack.c.l.b16 %v238
        %v307 = vunpack.c.l.b16 %v239
        %v308 = vunpack.c.l.b16 %v240
        %v309 = vunpack.c.l.b16 %v241
        %v310 = vunpack.c.l.b16 %v242
        %v311 = vunpack.c.l.b16 %v243
        %v312 = vunpack.c.l.b16 %v244
        %v313 = vunpack.c.l.b16 %v245
        %v314 = vunpack.c.l.b16 %v246
        %v315 = vunpack.c.l.b16 %v247
        %v316 = vunpack.c.l.b16 %v248
        %v317 = vunpack.c.l.b16 %v249
        %v318 = vunpack.c.l.b16 %v250
        %v319 = vunpack.c.l.b16 %v251
        %v320 = vunpack.c.l.b16 %v252
        %v321 = vunpack.c.l.b16 %v253
        %v322 = vunpack.c.l.b16 %v254
        %v323 = vunpack.c.l.b16 %v255
        %v324 = vunpack.c.l.b16 %v256
        %v325 = vunpack.c.l.b16 %v257
        %v326 = vunpack.c.l.b16 %v258
        %v327 = vunpack.c.l.b16 %v259
        %v328 = vpack.c.b16 %v297, %v296
        %v329 = vpack.c.b16 %v299, %v298
        %v330 = vpack.c.b16 %v301, %v300
        %v331 = vpack.c.b16 %v303, %v302
        %v332 = vpack.c.b16 %v305, %v304
        %v333 = vpack.c.b16 %v307, %v306
        %v334 = vpack.c.b16 %v309, %v308
        %v335 = vpack.c.b16 %v311, %v310
        %v336 = vpack.c.b16 %v313, %v312
        %v337 = vpack.c.b16 %v315, %v314
        %v338 = vpack.c.b16 %v317, %v316
        %v339 = vpack.c.b16 %v319, %v318
        %v340 = vpack.c.b16 %v321, %v320
        %v341 = vpack.c.b16 %v323, %v322
        %v342 = vpack.c.b16 %v325, %v324
        %v343 = vpack.c.b16 %v327, %v326
        %v348 = vunpack.c.l.b16 %v260
        %v349 = vunpack.c.l.b16 %v261
        %v350 = vunpack.c.l.b16 %v262
        %v351 = vunpack.c.l.b16 %v263
        %v352 = vpack.c.b16 %v349, %v348
        %v353 = vpack.c.b16 %v351, %v350
        %vm356 = vcmask 261120
        %v358 = vsel %vm356, %v328, 0
        %v361 = vsel %vm356, %v329, 0
        %v364 = vsel %vm356, %v330, 0
        %v367 = vsel %vm356, %v331, 0
        %v370 = vsel %vm356, %v332, 0
        %v373 = vsel %vm356, %v333, 0
        %v376 = vsel %vm356, %v334, 0
        %v379 = vsel %vm356, %v335, 0
        %v382 = vsel %vm356, %v336, 0
        %v385 = vsel %vm356, %v337, 0
        %v388 = vsel %vm356, %v338, 0
        %v391 = vsel %vm356, %v339, 0
        %v394 = vsel %vm356, %v340, 0
        %v397 = vsel %vm356, %v341, 0
        %v400 = vsel %vm356, %v342, 0
        %v403 = vsel %vm356, %v343, 0
        %405 = vmatprep.subr.bf16.mxu0 0
        %406 = vmatpush1.bf16.msra.mxu0 %v352
        %407 = vmatprep.subr.bf16.mxu0 0
        %408 = vmatpush1.bf16.msra.mxu0 %v353
        %409 = vmatprep.subr.bf16.mxu0 0
        %410 = vmatpush1.bf16.msra.mxu0 0
        %411 = vmatprep.subr.bf16.mxu0 0
        %412 = vmatpush1.bf16.msra.mxu0 0
        %413 = vmatprep.subr.bf16.mxu0 0
        %414 = vmatpush1.bf16.msra.mxu0 0
        %415 = vmatprep.subr.bf16.mxu0 0
        %416 = vmatpush1.bf16.msra.mxu0 0
        %417 = vmatprep.subr.bf16.mxu0 0
        %418 = vmatpush1.bf16.msra.mxu0 0
        %419 = vmatprep.subr.bf16.mxu0 0
        %420 = vmatpush1.bf16.msra.mxu0 0
        %421 = vmatprep.subr.bf16.mxu0 0
        %422 = vmatpush1.bf16.msra.mxu0 0
        %423 = vmatprep.subr.bf16.mxu0 0
        %424 = vmatpush1.bf16.msra.mxu0 0
        %425 = vmatprep.subr.bf16.mxu0 0
        %426 = vmatpush1.bf16.msra.mxu0 0
        %427 = vmatprep.subr.bf16.mxu0 0
        %428 = vmatpush1.bf16.msra.mxu0 0
        %429 = vmatprep.subr.bf16.mxu0 0
        %430 = vmatpush1.bf16.msra.mxu0 0
        %431 = vmatprep.subr.bf16.mxu0 0
        %432 = vmatpush1.bf16.msra.mxu0 0
        %433 = vmatprep.subr.bf16.mxu0 0
        %434 = vmatpush1.bf16.msra.mxu0 0
        %435 = vmatprep.subr.bf16.mxu0 0
        %436 = vmatpush1.bf16.msra.mxu0 0
        %437 = vmatprep.mubr.bf16.mxu0 0
        %438 = vmatmul.mubr.bf16.gmra.mrb[0].mxu0 %v358
        %v439 = vpop.f32.mrb[0].mxu0
        %v440 = vadd.f32 0.0, %v439
        %v441 = vpop.f32.mrb[0].mxu0
        %v442 = vpop.f32.mrb[0].mxu0
        %v443 = vadd.f32 0.0, %v442
        %v444 = vpop.f32.mrb[0].mxu0
        %445 = vmatprep.mubr.bf16.mxu0 0
        %446 = vmatmul.mubr.bf16.gmra.mrb[0].mxu0 %v361
        %v447 = vpop.f32.mrb[0].mxu0
        %v448 = vadd.f32 0.0, %v447
        %v449 = vpop.f32.mrb[0].mxu0
        %v450 = vpop.f32.mrb[0].mxu0
        %v451 = vadd.f32 0.0, %v450
        %v452 = vpop.f32.mrb[0].mxu0
        %453 = vmatprep.mubr.bf16.mxu0 0
        %454 = vmatmul.mubr.bf16.gmra.mrb[0].mxu0 %v364
        %v455 = vpop.f32.mrb[0].mxu0
        %v456 = vadd.f32 0.0, %v455
        %v457 = vpop.f32.mrb[0].mxu0
        %v458 = vpop.f32.mrb[0].mxu0
        %v459 = vadd.f32 0.0, %v458
        %v460 = vpop.f32.mrb[0].mxu0
        %461 = vmatprep.mubr.bf16.mxu0 0
        %462 = vmatmul.mubr.bf16.gmra.mrb[0].mxu0 %v367
        %v463 = vpop.f32.mrb[0].mxu0
        %v464 = vadd.f32 0.0, %v463
        %v465 = vpop.f32.mrb[0].mxu0
        %v466 = vpop.f32.mrb[0].mxu0
        %v467 = vadd.f32 0.0, %v466
        %v468 = vpop.f32.mrb[0].mxu0
        %469 = vmatprep.mubr.bf16.mxu0 0
        %470 = vmatmul.mubr.bf16.gmra.mrb[0].mxu0 %v370
        %v471 = vpop.f32.mrb[0].mxu0
        %v472 = vadd.f32 0.0, %v471
        %v473 = vpop.f32.mrb[0].mxu0
        %v474 = vpop.f32.mrb[0].mxu0
        %v475 = vadd.f32 0.0, %v474
        %v476 = vpop.f32.mrb[0].mxu0
        %477 = vmatprep.mubr.bf16.mxu0 0
        %478 = vmatmul.mubr.bf16.gmra.mrb[0].mxu0 %v373
        %v479 = vpop.f32.mrb[0].mxu0
        %v480 = vadd.f32 0.0, %v479
        %v481 = vpop.f32.mrb[0].mxu0
        %v482 = vpop.f32.mrb[0].mxu0
        %v483 = vadd.f32 0.0, %v482
        %v484 = vpop.f32.mrb[0].mxu0
        %485 = vmatprep.mubr.bf16.mxu0 0
        %486 = vmatmul.mubr.bf16.gmra.mrb[0].mxu0 %v376
        %v487 = vpop.f32.mrb[0].mxu0
        %v488 = vadd.f32 0.0, %v487
        %v489 = vpop.f32.mrb[0].mxu0
        %v490 = vpop.f32.mrb[0].mxu0
        %v491 = vadd.f32 0.0, %v490
        %v492 = vpop.f32.mrb[0].mxu0
        %493 = vmatprep.mubr.bf16.mxu0 0
        %494 = vmatmul.mubr.bf16.gmra.mrb[0].mxu0 %v379
        %v495 = vpop.f32.mrb[0].mxu0
        %v496 = vadd.f32 0.0, %v495
        %v497 = vpop.f32.mrb[0].mxu0
        %v498 = vpop.f32.mrb[0].mxu0
        %v499 = vadd.f32 0.0, %v498
        %v500 = vpop.f32.mrb[0].mxu0
        %501 = vmatprep.mubr.bf16.mxu0 0
        %502 = vmatmul.mubr.bf16.gmra.mrb[0].mxu0 %v382
        %v503 = vpop.f32.mrb[0].mxu0
        %v504 = vadd.f32 0.0, %v503
        %v505 = vpop.f32.mrb[0].mxu0
        %v506 = vpop.f32.mrb[0].mxu0
        %v507 = vadd.f32 0.0, %v506
        %v508 = vpop.f32.mrb[0].mxu0
        %509 = vmatprep.mubr.bf16.mxu0 0
        %510 = vmatmul.mubr.bf16.gmra.mrb[0].mxu0 %v385
        %v511 = vpop.f32.mrb[0].mxu0
        %v512 = vadd.f32 0.0, %v511
        %v513 = vpop.f32.mrb[0].mxu0
        %v514 = vpop.f32.mrb[0].mxu0
        %v515 = vadd.f32 0.0, %v514
        %v516 = vpop.f32.mrb[0].mxu0
        %517 = vmatprep.mubr.bf16.mxu0 0
        %518 = vmatmul.mubr.bf16.gmra.mrb[0].mxu0 %v388
        %v519 = vpop.f32.mrb[0].mxu0
        %v520 = vadd.f32 0.0, %v519
        %v521 = vpop.f32.mrb[0].mxu0
        %v522 = vpop.f32.mrb[0].mxu0
        %v523 = vadd.f32 0.0, %v522
        %v524 = vpop.f32.mrb[0].mxu0
        %525 = vmatprep.mubr.bf16.mxu0 0
        %526 = vmatmul.mubr.bf16.gmra.mrb[0].mxu0 %v391
        %v527 = vpop.f32.mrb[0].mxu0
        %v528 = vadd.f32 0.0, %v527
        %v529 = vpop.f32.mrb[0].mxu0
        %v530 = vpop.f32.mrb[0].mxu0
        %v531 = vadd.f32 0.0, %v530
        %v532 = vpop.f32.mrb[0].mxu0
        %533 = vmatprep.mubr.bf16.mxu0 0
        %534 = vmatmul.mubr.bf16.gmra.mrb[0].mxu0 %v394
        %v535 = vpop.f32.mrb[0].mxu0
        %v536 = vadd.f32 0.0, %v535
        %v537 = vpop.f32.mrb[0].mxu0
        %v538 = vpop.f32.mrb[0].mxu0
        %v539 = vadd.f32 0.0, %v538
        %v540 = vpop.f32.mrb[0].mxu0
        %541 = vmatprep.mubr.bf16.mxu0 0
        %542 = vmatmul.mubr.bf16.gmra.mrb[0].mxu0 %v397
        %v543 = vpop.f32.mrb[0].mxu0
        %v544 = vadd.f32 0.0, %v543
        %v545 = vpop.f32.mrb[0].mxu0
        %v546 = vpop.f32.mrb[0].mxu0
        %v547 = vadd.f32 0.0, %v546
        %v548 = vpop.f32.mrb[0].mxu0
        %549 = vmatprep.mubr.bf16.mxu0 0
        %550 = vmatmul.mubr.bf16.gmra.mrb[0].mxu0 %v400
        %v551 = vpop.f32.mrb[0].mxu0
        %v552 = vadd.f32 0.0, %v551
        %v553 = vpop.f32.mrb[0].mxu0
        %v554 = vpop.f32.mrb[0].mxu0
        %v555 = vadd.f32 0.0, %v554
        %v556 = vpop.f32.mrb[0].mxu0
        %557 = vmatprep.mubr.bf16.mxu0 0
        %558 = vmatmul.mubr.bf16.gmra.mrb[0].mxu0 %v403
        %v559 = vpop.f32.mrb[0].mxu0
        %v560 = vadd.f32 0.0, %v559
        %v561 = vpop.f32.mrb[0].mxu0
        %v562 = vpop.f32.mrb[0].mxu0
        %v563 = vadd.f32 0.0, %v562
        %v564 = vpop.f32.mrb[0].mxu0
        %565 = vdwg.mxu0
        %vm566 = vcmask 523264
        %567 = vst.msk [vmem:[#allocation2] sm:$0xff] %vm566, %v440
        %568 = vst.msk [vmem:[#allocation2 + $0x8] sm:$0xff] %vm566, %v443
        %569 = vst.msk [vmem:[#allocation2 + $0x10] sm:$0xff] %vm566, %v448
        %570 = vst.msk [vmem:[#allocation2 + $0x18] sm:$0xff] %vm566, %v451
        %571 = vst.msk [vmem:[#allocation2 + $0x20] sm:$0xff] %vm566, %v456
        %572 = vst.msk [vmem:[#allocation2 + $0x28] sm:$0xff] %vm566, %v459
        %573 = vst.msk [vmem:[#allocation2 + $0x30] sm:$0xff] %vm566, %v464
        %574 = vst.msk [vmem:[#allocation2 + $0x38] sm:$0xff] %vm566, %v467
        %575 = vst.msk [vmem:[#allocation2 + $0x40] sm:$0xff] %vm566, %v472
        %576 = vst.msk [vmem:[#allocation2 + $0x48] sm:$0xff] %vm566, %v475
        %577 = vst.msk [vmem:[#allocation2 + $0x50] sm:$0xff] %vm566, %v480
        %578 = vst.msk [vmem:[#allocation2 + $0x58] sm:$0xff] %vm566, %v483
        %579 = vst.msk [vmem:[#allocation2 + $0x60] sm:$0xff] %vm566, %v488
        %580 = vst.msk [vmem:[#allocation2 + $0x68] sm:$0xff] %vm566, %v491
        %581 = vst.msk [vmem:[#allocation2 + $0x70] sm:$0xff] %vm566, %v496
        %582 = vst.msk [vmem:[#allocation2 + $0x78] sm:$0xff] %vm566, %v499
        %583 = vst.msk [vmem:[#allocation2 + $0x80] sm:$0xff] %vm566, %v504
        %584 = vst.msk [vmem:[#allocation2 + $0x88] sm:$0xff] %vm566, %v507
        %585 = vst.msk [vmem:[#allocation2 + $0x90] sm:$0xff] %vm566, %v512
        %586 = vst.msk [vmem:[#allocation2 + $0x98] sm:$0xff] %vm566, %v515
        %587 = vst.msk [vmem:[#allocation2 + $0xa0] sm:$0xff] %vm566, %v520
        %588 = vst.msk [vmem:[#allocation2 + $0xa8] sm:$0xff] %vm566, %v523
        %589 = vst.msk [vmem:[#allocation2 + $0xb0] sm:$0xff] %vm566, %v528
        %590 = vst.msk [vmem:[#allocation2 + $0xb8] sm:$0xff] %vm566, %v531
        %591 = vst.msk [vmem:[#allocation2 + $0xc0] sm:$0xff] %vm566, %v536
        %592 = vst.msk [vmem:[#allocation2 + $0xc8] sm:$0xff] %vm566, %v539
        %593 = vst.msk [vmem:[#allocation2 + $0xd0] sm:$0xff] %vm566, %v544
        %594 = vst.msk [vmem:[#allocation2 + $0xd8] sm:$0xff] %vm566, %v547
        %595 = vst.msk [vmem:[#allocation2 + $0xe0] sm:$0xff] %vm566, %v552
        %596 = vst.msk [vmem:[#allocation2 + $0xe8] sm:$0xff] %vm566, %v555
        %597 = vst.msk [vmem:[#allocation2 + $0xf0] sm:$0xff] %vm566, %v560
        %598 = vst.msk [vmem:[#allocation2 + $0xf8] sm:$0xff] %vm566, %v563
        %v599 = vld [vmem:[#allocation2] sm:$0xff]
        %v600 = vld [vmem:[#allocation2 + $0x8] sm:$0xff]
        %v601 = vld [vmem:[#allocation2 + $0x10] sm:$0xff]
        %v602 = vld [vmem:[#allocation2 + $0x18] sm:$0xff]
        %v603 = vld [vmem:[#allocation2 + $0x20] sm:$0xff]
        %v604 = vld [vmem:[#allocation2 + $0x28] sm:$0xff]
        %v605 = vld [vmem:[#allocation2 + $0x30] sm:$0xff]
        %v606 = vld [vmem:[#allocation2 + $0x38] sm:$0xff]
        %v607 = vld [vmem:[#allocation2 + $0x40] sm:$0xff]
        %v608 = vld [vmem:[#allocation2 + $0x48] sm:$0xff]
        %v609 = vld [vmem:[#allocation2 + $0x50] sm:$0xff]
        %v610 = vld [vmem:[#allocation2 + $0x58] sm:$0xff]
        %v611 = vld [vmem:[#allocation2 + $0x60] sm:$0xff]
        %v612 = vld [vmem:[#allocation2 + $0x68] sm:$0xff]
        %v613 = vld [vmem:[#allocation2 + $0x70] sm:$0xff]
        %v614 = vld [vmem:[#allocation2 + $0x78] sm:$0xff]
        %v615 = vld [vmem:[#allocation2 + $0x80] sm:$0xff]
        %v616 = vld [vmem:[#allocation2 + $0x88] sm:$0xff]
        %v617 = vld [vmem:[#allocation2 + $0x90] sm:$0xff]
        %v618 = vld [vmem:[#allocation2 + $0x98] sm:$0xff]
        %v619 = vld [vmem:[#allocation2 + $0xa0] sm:$0xff]
        %v620 = vld [vmem:[#allocation2 + $0xa8] sm:$0xff]
        %v621 = vld [vmem:[#allocation2 + $0xb0] sm:$0xff]
        %v622 = vld [vmem:[#allocation2 + $0xb8] sm:$0xff]
        %v623 = vld [vmem:[#allocation2 + $0xc0] sm:$0xff]
        %v624 = vld [vmem:[#allocation2 + $0xc8] sm:$0xff]
        %v625 = vld [vmem:[#allocation2 + $0xd0] sm:$0xff]
        %v626 = vld [vmem:[#allocation2 + $0xd8] sm:$0xff]
        %v627 = vld [vmem:[#allocation2 + $0xe0] sm:$0xff]
        %v628 = vld [vmem:[#allocation2 + $0xe8] sm:$0xff]
        %v629 = vld [vmem:[#allocation2 + $0xf0] sm:$0xff]
        %v630 = vld [vmem:[#allocation2 + $0xf8] sm:$0xff]
        %v631 = vld [vmem:[%s2] sm:$0x1]
        %v633 = vlaneseq
        %v634 = vshrl.u32 %v633, 7
        %v635 = vsub.s32 0, %v634
        %v636 = vrot.slane %v631, %v635
        %v638 = vmul.f32 %v599, %v636
        %v639 = vmul.f32 %v600, %v636
        %v640 = vmul.f32 %v601, %v636
        %v641 = vmul.f32 %v602, %v636
        %v642 = vmul.f32 %v603, %v636
        %v643 = vmul.f32 %v604, %v636
        %v644 = vmul.f32 %v605, %v636
        %v645 = vmul.f32 %v606, %v636
        %v646 = vmul.f32 %v607, %v636
        %v647 = vmul.f32 %v608, %v636
        %v648 = vmul.f32 %v609, %v636
        %v649 = vmul.f32 %v610, %v636
        %v650 = vmul.f32 %v611, %v636
        %v651 = vmul.f32 %v612, %v636
        %v652 = vmul.f32 %v613, %v636
        %v653 = vmul.f32 %v614, %v636
        %v654 = vmul.f32 %v615, %v636
        %v655 = vmul.f32 %v616, %v636
        %v656 = vmul.f32 %v617, %v636
        %v657 = vmul.f32 %v618, %v636
        %v658 = vmul.f32 %v619, %v636
        %v659 = vmul.f32 %v620, %v636
        %v660 = vmul.f32 %v621, %v636
        %v661 = vmul.f32 %v622, %v636
        %v662 = vmul.f32 %v623, %v636
        %v663 = vmul.f32 %v624, %v636
        %v664 = vmul.f32 %v625, %v636
        %v665 = vmul.f32 %v626, %v636
        %v666 = vmul.f32 %v627, %v636
        %v667 = vmul.f32 %v628, %v636
        %v668 = vmul.f32 %v629, %v636
        %v669 = vmul.f32 %v630, %v636
        %v670 = vld [vmem:[%s3] sm:$0x1]
        %v672 = vlaneseq
        %v673 = vshrl.u32 %v672, 7
        %v674 = vsub.s32 0, %v673
        %v675 = vrot.slane %v670, %v674
        %v677 = vadd.f32 %v638, %v675
        %v678 = vadd.f32 %v639, %v675
        %v679 = vadd.f32 %v640, %v675
        %v680 = vadd.f32 %v641, %v675
        %v681 = vadd.f32 %v642, %v675
        %v682 = vadd.f32 %v643, %v675
        %v683 = vadd.f32 %v644, %v675
        %v684 = vadd.f32 %v645, %v675
        %v685 = vadd.f32 %v646, %v675
        %v686 = vadd.f32 %v647, %v675
        %v687 = vadd.f32 %v648, %v675
        %v688 = vadd.f32 %v649, %v675
        %v689 = vadd.f32 %v650, %v675
        %v690 = vadd.f32 %v651, %v675
        %v691 = vadd.f32 %v652, %v675
        %v692 = vadd.f32 %v653, %v675
        %v693 = vadd.f32 %v654, %v675
        %v694 = vadd.f32 %v655, %v675
        %v695 = vadd.f32 %v656, %v675
        %v696 = vadd.f32 %v657, %v675
        %v697 = vadd.f32 %v658, %v675
        %v698 = vadd.f32 %v659, %v675
        %v699 = vadd.f32 %v660, %v675
        %v700 = vadd.f32 %v661, %v675
        %v701 = vadd.f32 %v662, %v675
        %v702 = vadd.f32 %v663, %v675
        %v703 = vadd.f32 %v664, %v675
        %v704 = vadd.f32 %v665, %v675
        %v705 = vadd.f32 %v666, %v675
        %v706 = vadd.f32 %v667, %v675
        %v707 = vadd.f32 %v668, %v675
        %v708 = vadd.f32 %v669, %v675
        %v709 = vmax.f32 %v677, 0.0
        %v710 = vmax.f32 %v678, 0.0
        %v711 = vmax.f32 %v679, 0.0
        %v712 = vmax.f32 %v680, 0.0
        %v713 = vmax.f32 %v681, 0.0
        %v714 = vmax.f32 %v682, 0.0
        %v715 = vmax.f32 %v683, 0.0
        %v716 = vmax.f32 %v684, 0.0
        %v717 = vmax.f32 %v685, 0.0
        %v718 = vmax.f32 %v686, 0.0
        %v719 = vmax.f32 %v687, 0.0
        %v720 = vmax.f32 %v688, 0.0
        %v721 = vmax.f32 %v689, 0.0
        %v722 = vmax.f32 %v690, 0.0
        %v723 = vmax.f32 %v691, 0.0
        %v724 = vmax.f32 %v692, 0.0
        %v725 = vmax.f32 %v693, 0.0
        %v726 = vmax.f32 %v694, 0.0
        %v727 = vmax.f32 %v695, 0.0
        %v728 = vmax.f32 %v696, 0.0
        %v729 = vmax.f32 %v697, 0.0
        %v730 = vmax.f32 %v698, 0.0
        %v731 = vmax.f32 %v699, 0.0
        %v732 = vmax.f32 %v700, 0.0
        %v733 = vmax.f32 %v701, 0.0
        %v734 = vmax.f32 %v702, 0.0
        %v735 = vmax.f32 %v703, 0.0
        %v736 = vmax.f32 %v704, 0.0
        %v737 = vmax.f32 %v705, 0.0
        %v738 = vmax.f32 %v706, 0.0
        %v739 = vmax.f32 %v707, 0.0
        %v740 = vmax.f32 %v708, 0.0
        %741 = vst.msk [vmem:[%s215] sm:$0xff] %vm566, %v709
        %742 = vst.msk [vmem:[%s215 + $0x8] sm:$0xff] %vm566, %v710
        %743 = vst.msk [vmem:[%s215 + $0x10] sm:$0xff] %vm566, %v711
        %744 = vst.msk [vmem:[%s215 + $0x18] sm:$0xff] %vm566, %v712
        %745 = vst.msk [vmem:[%s215 + $0x20] sm:$0xff] %vm566, %v713
        %746 = vst.msk [vmem:[%s215 + $0x28] sm:$0xff] %vm566, %v714
        %747 = vst.msk [vmem:[%s215 + $0x30] sm:$0xff] %vm566, %v715
        %748 = vst.msk [vmem:[%s215 + $0x38] sm:$0xff] %vm566, %v716
        %749 = vst.msk [vmem:[%s215 + $0x40] sm:$0xff] %vm566, %v717
        %750 = vst.msk [vmem:[%s215 + $0x48] sm:$0xff] %vm566, %v718
        %751 = vst.msk [vmem:[%s215 + $0x50] sm:$0xff] %vm566, %v719
        %752 = vst.msk [vmem:[%s215 + $0x58] sm:$0xff] %vm566, %v720
        %753 = vst.msk [vmem:[%s215 + $0x60] sm:$0xff] %vm566, %v721
        %754 = vst.msk [vmem:[%s215 + $0x68] sm:$0xff] %vm566, %v722
        %755 = vst.msk [vmem:[%s215 + $0x70] sm:$0xff] %vm566, %v723
        %756 = vst.msk [vmem:[%s215 + $0x78] sm:$0xff] %vm566, %v724
        %757 = vst.msk [vmem:[%s215 + $0x80] sm:$0xff] %vm566, %v725
        %758 = vst.msk [vmem:[%s215 + $0x88] sm:$0xff] %vm566, %v726
        %759 = vst.msk [vmem:[%s215 + $0x90] sm:$0xff] %vm566, %v727
        %760 = vst.msk [vmem:[%s215 + $0x98] sm:$0xff] %vm566, %v728
        %761 = vst.msk [vmem:[%s215 + $0xa0] sm:$0xff] %vm566, %v729
        %762 = vst.msk [vmem:[%s215 + $0xa8] sm:$0xff] %vm566, %v730
        %763 = vst.msk [vmem:[%s215 + $0xb0] sm:$0xff] %vm566, %v731
        %764 = vst.msk [vmem:[%s215 + $0xb8] sm:$0xff] %vm566, %v732
        %765 = vst.msk [vmem:[%s215 + $0xc0] sm:$0xff] %vm566, %v733
        %766 = vst.msk [vmem:[%s215 + $0xc8] sm:$0xff] %vm566, %v734
        %767 = vst.msk [vmem:[%s215 + $0xd0] sm:$0xff] %vm566, %v735
        %768 = vst.msk [vmem:[%s215 + $0xd8] sm:$0xff] %vm566, %v736
        %769 = vst.msk [vmem:[%s215 + $0xe0] sm:$0xff] %vm566, %v737
        %770 = vst.msk [vmem:[%s215 + $0xe8] sm:$0xff] %vm566, %v738
        %771 = vst.msk [vmem:[%s215 + $0xf0] sm:$0xff] %vm566, %v739
        %772 = vst.msk [vmem:[%s215 + $0xf8] sm:$0xff] %vm566, %v740
        %s773 = sand.u32 %s131, 1
        %s774 = scalar_lea.sflag [#allocation4], %s773
        %s775 = sand.u32 %s131, 1
        %s776 = smul.addr %s775, 256
        %s777 = scalar_lea.vmem [#allocation3], %s776
        // Predicated region
        $region37: #{tpu_custom_call.1} parent=35 // pred_check
          %p778 = pneg %p141
        $region38: #{tpu_custom_call.1} parent=35 // pred_check_branch
          %780 = sbr.rel (%p778) target = $region40
        $region39: #{tpu_custom_call.1} parent=35 // pred_region
          %s781 = smul.u32 8, %s23
          %s783 = ssub.s32 4096, 4096
          %784 = vsyncadd %s774, %s783
          %s785 = smul.addr %s22, 32
          %s786 = sadd.s32 %s781, %s785
          %s787 = smul.addr %s786, 128
          %s788 = scalar_lea.hbm %s4, %s787
          %s789 = sshll.u32 %s777, 4
          %s790 = int_to_ptr.vmem [resolvable:$true] %s789
          %795 = dma.vmem_to_hbm [thread:$0]  %s790, 4096, %s788, %s774, 128, 128, 8
        $region40: #{tpu_custom_call.1} parent=35 // pred_fallthru
          _
      $region36: #{tpu_custom_call.1} parent=5 // pred_fallthru
        _
      %p796 = scmp.le.s32.totalorder 2, %s13
      // Predicated region
      $region41: #{tpu_custom_call.1} parent=5 // pred_check
        %p797 = pneg %p796
      $region42: #{tpu_custom_call.1} parent=5 // pred_check_branch
        %799 = sbr.rel (%p797) target = $region44
      $region43: #{tpu_custom_call.1} parent=5 // pred_region
        %s800 = ssub.s32 %s13, 2
        // Predicated region
        $region45: #{tpu_custom_call.1} parent=43 // pred_check
          %p801 = pneg %p147
        $region46: #{tpu_custom_call.1} parent=43 // pred_check_branch
          %803 = sbr.rel (%p801) target = $region48
        $region47: #{tpu_custom_call.1} parent=43 // pred_region
          %s804 = sand.u32 %s132, 1
          %s805 = scalar_lea.sflag [#allocation4], %s804
          %s806 = sand.u32 %s132, 1
          %s807 = smul.addr %s806, 256
          %s808 = scalar_lea.vmem [#allocation3], %s807
          %809 = dma.done %s805, 4096
        $region48: #{tpu_custom_call.1} parent=43 // pred_fallthru
          _
      $region44: #{tpu_custom_call.1} parent=5 // pred_fallthru
        _
    $region6: #{tpu_custom_call.1} parent=1 // loop_footer
      %s17 = sadd.s32 1, %s13
    $region7: #{tpu_custom_call.1} parent=1 // loop_footer_branch
      %12 = sbr.rel target = $region3
    $region8: #{tpu_custom_call.1} parent=1 // loop_exit
      _
    %810 = vsyncpa [#allocation4], 1
    %s811 = scalar_lea.sflag [#allocation4], 1
    %812 = vsyncpa %s811, 1

</llo_original>
